<compile_context>
chip_gen: v5e
topology: v5e:2x2
jax: 0.10.0
libtpu: 0.0.40
codegen_flags: <defaults>
</compile_context>

<pallas_src>
import functools

import jax
import jax.numpy as jnp
from jax import lax
from jax.experimental import pallas as pl
from jax.experimental.pallas import tpu as pltpu

K = 5          # kernal_size in the PyTorch module
PAD = K // 2   # padding = kernal_size // 2


# ---------------------------------------------------------------------------
# Host-side precompute
# ---------------------------------------------------------------------------
def _build_tap_weight_matrix(weight, D):
    """(1,2,K,K,K) conv weight -> (K*K*D, 2*D) banded depth-contraction matrix.

    Row (t, d) with t = kh*K + kw, column (c, d2) holds
        w[c, d2 - d + PAD, kh, kw]   if 0 <= d2 - d + PAD < K else 0,
    so `W_big @ concat([avg, max], axis=0)` evaluates, for every in-plane tap
    t, the full (channel x zero-padded depth window) contraction on the MXU.
    """
    w = weight.reshape(2, K, K, K).astype(jnp.float32)        # (c, kd, kh, kw)
    t = jnp.arange(K * K)
    kh, kw = t // K, t % K
    d = jnp.arange(D)
    kd = d[None, :] - d[:, None] + PAD                        # (d, d2)
    valid = (kd >= 0) & (kd < K)
    kd_c = jnp.clip(kd, 0, K - 1)
    wt = w[:, :, kh, kw]                                      # (c, kd, t)
    gath = wt[:, kd_c, :]                                     # (c, d, d2, t)
    gath = jnp.where(valid[None, :, :, None], gath, 0.0)
    # -> rows ordered (t, d), cols ordered (c, d2)
    return jnp.transpose(gath, (3, 1, 0, 2)).reshape(K * K * D, 2 * D)


def _build_tap_masks(H, W):
    """(K*K, H*W) {0,1} f32 masks of output positions where tap (kh,kw) is in-bounds."""
    p = jnp.arange(H * W)
    h, w = p // W, p % W
    rows = []
    for kh in range(K):
        dh = kh - PAD
        for kw in range(K):
            dw = kw - PAD
            rows.append((h + dh >= 0) & (h + dh < H) & (w + dw >= 0) & (w + dw < W))
    return jnp.stack(rows, axis=0).astype(jnp.float32)


def _default_vmem_limit_bytes():
    """~75% of physical VMEM: ~96 MiB on v5e/v6e, ~48 MiB on v7x; safe fallback 48 MiB."""
    try:
        cap = int(pltpu.get_tpu_info().vmem_capacity_bytes)
    except Exception:
        cap = 64 * 1024 * 1024      # conservative (v7x-sized) fallback
    return min((cap * 3) // 4, 100 * 1024 * 1024)


def _pick_c_block(C, D, HW, itemsize, vmem_limit_bytes, buffers=2):
    """Largest divisor of C whose double-buffered x slab + fixed footprint fits VMEM."""
    plane_f32 = D * HW * 4
    plane_in = D * HW * itemsize
    fixed = (2 * plane_f32                        # sum / max accumulators
             + 2 * plane_in                       # double-buffered output block
             + (K * K + 6) * plane_f32            # feats + mix_all + acc + slack
             + 2 * (K * K * D) * (2 * D) * 4      # banded weight matrix (2 bufs)
             + 2 * (K * K) * HW * 4)              # tap masks (2 bufs)
    avail = vmem_limit_bytes - fixed
    cb = max(1, avail // (buffers * plane_in)) if avail > 0 else 1
    cb = int(min(C, cb))
    while C % cb:
        cb -= 1
    return cb


# ---------------------------------------------------------------------------
# Kernel
# ---------------------------------------------------------------------------
def _spatial_attention_kernel(wb_ref, mask_ref, x_ref, o_ref, sum_ref, max_ref,
                              *, C, W):
    # wb_ref:   (K*K*D, 2*D) f32 banded weight matrix (VMEM)
    # mask_ref: (K*K, H*W)   f32 per-tap edge masks   (VMEM)
    # x_ref:    (1, c_block, D, H*W) one channel chunk of one batch element
    # o_ref:    (1, D, H*W)
    # sum/max:  (D, H*W) f32 VMEM scratch (running channel sum / running max)
    ci = pl.program_id(1)
    num_c = pl.num_programs(1)
    D, HW = sum_ref.shape

    @pl.when(ci == 0)
    def _init():
        sum_ref[...] = jnp.zeros(sum_ref.shape, dtype=sum_ref.dtype)
        max_ref[...] = jnp.full(max_ref.shape, -jnp.inf, dtype=max_ref.dtype)

    # --- streamed channel reduction (pure HBM streaming, ~free VALU work) ---
    xc = x_ref[0].astype(jnp.float32)                    # (c_block, D, HW)
    sum_ref[...] = sum_ref[...] + jnp.sum(xc, axis=0)
    max_ref[...] = jnp.maximum(max_ref[...], jnp.max(xc, axis=0))

    # --- finalize: 5x5x5 conv + sigmoid, once per batch element ---
    @pl.when(ci == num_c - 1)
    def _finalize():
        avg = sum_ref[...] * jnp.float32(1.0 / C)                       # (D, HW)
        feats = jnp.concatenate([avg, max_ref[...]], axis=0)            # (2D, HW)

        # One MXU matmul computes, for all 25 in-plane taps, the full
        # (channel x padded-depth) contraction: (25*D, 2*D) @ (2*D, HW).
        mix_all = jnp.dot(wb_ref[...], feats,
                          preferred_element_type=jnp.float32)           # (25*D, HW)

        # Per tap: one lane roll (XLU) + one masked accumulate (VPU).
        acc = jnp.zeros((D, HW), jnp.float32)
        for kh in range(K):
            dh = kh - PAD
            for kw in range(K):
                dw = kw - PAD
                t = kh * K + kw
                mix = mix_all[t * D:(t + 1) * D, :]                     # (D, HW)
                if dh == 0 and dw == 0:
                    acc = acc + mix
                else:
                    shift = (-(dh * W + dw)) % HW
                    rolled = pltpu.roll(mix, shift, 1) if shift else mix
                    acc = acc + rolled * mask_ref[pl.ds(t, 1), :]       # (1,HW) bcast
        o_ref[0] = jax.nn.sigmoid(acc).astype(o_ref.dtype)


# ---------------------------------------------------------------------------
# Wrapper
# ---------------------------------------------------------------------------
def spatial_attention(x, weight, *, c_block=None, vmem_limit_bytes=None):
    """x: (N, C, D, H, W); weight: (1, 2, K, K, K) -> (N, 1, D, H, W)."""
    N, C, D, H, W = x.shape
    HW = H * W
    KK = K * K

    w_big = _build_tap_weight_matrix(weight, D)          # (KK*D, 2*D) f32
    masks = _build_tap_masks(H, W)                       # (KK, HW)    f32

    if vmem_limit_bytes is None:
        vmem_limit_bytes = _default_vmem_limit_bytes()
    itemsize = jnp.dtype(x.dtype).itemsize
    if c_block is None:
        c_block = _pick_c_block(C, D, HW, itemsize, vmem_limit_bytes)
    assert C % c_block == 0, (C, c_block)
    num_c = C // c_block

    x_flat = x.reshape(N, C, D, HW)                      # lane-dense: last dim = H*W

    kernel = functools.partial(_spatial_attention_kernel, C=C, W=W)
    out = pl.pallas_call(
        kernel,
        out_shape=jax.ShapeDtypeStruct((N, D, HW), x.dtype),
        grid=(N, num_c),
        in_specs=[
            pl.BlockSpec((KK * D, 2 * D), lambda n, c: (0, 0)),         # banded weights
            pl.BlockSpec((KK, HW), lambda n, c: (0, 0)),                # tap edge masks
            pl.BlockSpec((1, c_block, D, HW), lambda n, c: (n, c, 0, 0)),
        ],
        out_specs=pl.BlockSpec((1, D, HW), lambda n, c: (n, 0, 0)),
        scratch_shapes=[
            pltpu.VMEM((D, HW), jnp.float32),    # running channel sum
            pltpu.VMEM((D, HW), jnp.float32),    # running channel max
        ],
        compiler_params=pltpu.CompilerParams(
            dimension_semantics=("parallel", "arbitrary"),
            vmem_limit_bytes=vmem_limit_bytes,
        ),
    )(w_big, masks, x_flat)
    return out.reshape(N, 1, D, H, W)


# ---------------------------------------------------------------------------
# Self-test
# ---------------------------------------------------------------------------
if __name__ == "__main__":
    key = jax.random.PRNGKey(0)
    kx, kwt = jax.random.split(key)

    # Small shapes consistent with a 5-D Conv3d input: (N, C, D, H, W)
    N, C, D, H, W = 2, 4, 8, 16, 16
    x = jax.random.normal(kx, (N, C, D, H, W), dtype=jnp.float32)
    # Deterministic synthetic Conv3d weight: (out=1, in=2, K, K, K), no bias.
    weight = jax.random.normal(kwt, (1, 2, K, K, K), dtype=jnp.float32) * 0.05

    # Pure-JAX reference (same math as the PyTorch forward).
    avg = jnp.mean(x, axis=1, keepdims=True)
    mx = jnp.max(x, axis=1, keepdims=True)
    cat = jnp.concatenate([avg, mx], axis=1)
    ref = jax.nn.sigmoid(
        lax.conv_general_dilated(
            cat, weight,
            window_strides=(1, 1, 1),
            padding=[(PAD, PAD)] * 3,
            dimension_numbers=("NCDHW", "OIDHW", "NCDHW"),
        )
    )

    # 1) auto byte-sized c_block (one channel slab per batch element here).
    out = jax.block_until_ready(spatial_attention(x, weight))
    assert out.shape == (N, 1, D, H, W), out.shape
    err = float(jnp.max(jnp.abs(out - ref)))
    assert jnp.allclose(out, ref, atol=2e-3, rtol=2e-3), err

    # 2) c_block=2 exercises the streamed channel reduction (2 chunks of 2).
    out2 = jax.block_until_ready(spatial_attention(x, weight, c_block=2))
    err2 = float(jnp.max(jnp.abs(out2 - ref)))
    assert jnp.allclose(out2, ref, atol=2e-3, rtol=2e-3), err2

    print("KERNEL_OK")
</pallas_src>

<mosaic_0001>
module attributes {stable_mosaic.version = 11 : i64} {
  func.func @_spatial_attention_kernel(%arg0: i32, %arg1: i32, %arg2: memref<200x16xf32, #tpu.memory_space<vmem>>, %arg3: memref<25x256xf32, #tpu.memory_space<vmem>>, %arg4: memref<1x4x8x256xf32, #tpu.memory_space<vmem>>, %arg5: memref<1x8x256xf32, #tpu.memory_space<vmem>>, %arg6: memref<8x256xf32, #tpu.memory_space<vmem>>, %arg7: memref<8x256xf32, #tpu.memory_space<vmem>>) attributes {dimension_semantics = [#tpu.dimension_semantics<parallel>, #tpu.dimension_semantics<arbitrary>], iteration_bounds = array<i64: 2, 1>, scalar_prefetch = 0 : i64, scratch_operands = 2 : i64, tpu.core_type = #tpu.core_type<tc>, window_params = [{pipeline_mode = #tpu.pipeline_mode<synchronous>, transform_indices = @transform_0, window_bounds = array<i64: 200, 16>}, {pipeline_mode = #tpu.pipeline_mode<synchronous>, transform_indices = @transform_1, window_bounds = array<i64: 25, 256>}, {transform_indices = @transform_2, window_bounds = array<i64: 1, 4, 8, 256>}, {transform_indices = @transform_3, window_bounds = array<i64: 1, 8, 256>}]} {
    %c0_i32 = arith.constant 0 : i32
    %0 = arith.cmpi eq, %arg1, %c0_i32 : i32
    %1 = arith.extui %0 : i1 to i32
    %c0_i32_0 = arith.constant 0 : i32
    %2 = arith.cmpi ne, %1, %c0_i32_0 : i32
    scf.if %2 {
      %cst_15 = arith.constant 0.000000e+00 : f32
      %16 = vector.broadcast %cst_15 : f32 to vector<8x256xf32>
      %c0_16 = arith.constant 0 : index
      %c0_17 = arith.constant 0 : index
      %17 = vector.load %arg6[%c0_16, %c0_17] : memref<8x256xf32, #tpu.memory_space<vmem>>, vector<8x256xf32>
      tpu.vector_store %arg6[%c0_16, %c0_17], %16 {strides = array<i32>} : memref<8x256xf32, #tpu.memory_space<vmem>>, vector<8x256xf32>,
      %cst_18 = arith.constant 0xFF800000 : f32
      %18 = vector.broadcast %cst_18 : f32 to vector<8x256xf32>
      %c0_19 = arith.constant 0 : index
      %c0_20 = arith.constant 0 : index
      %19 = vector.load %arg7[%c0_19, %c0_20] : memref<8x256xf32, #tpu.memory_space<vmem>>, vector<8x256xf32>
      tpu.vector_store %arg7[%c0_19, %c0_20], %18 {strides = array<i32>} : memref<8x256xf32, #tpu.memory_space<vmem>>, vector<8x256xf32>,
    } else {
    }
    %c0 = arith.constant 0 : index
    %c0_1 = arith.constant 0 : index
    %c0_2 = arith.constant 0 : index
    %c0_3 = arith.constant 0 : index
    %3 = vector.load %arg4[%c0, %c0_1, %c0_2, %c0_3] : memref<1x4x8x256xf32, #tpu.memory_space<vmem>>, vector<1x4x8x256xf32>
    %4 = vector.shape_cast %3 : vector<1x4x8x256xf32> to vector<4x8x256xf32>
    %c0_4 = arith.constant 0 : index
    %c0_5 = arith.constant 0 : index
    %5 = vector.load %arg6[%c0_4, %c0_5] : memref<8x256xf32, #tpu.memory_space<vmem>>, vector<8x256xf32>
    %cst = arith.constant dense<0.000000e+00> : vector<8x256xf32>
    %6 = vector.multi_reduction <add>, %4, %cst [0] : vector<4x8x256xf32> to vector<8x256xf32>
    %7 = arith.addf %5, %6 : vector<8x256xf32>
    %c0_6 = arith.constant 0 : index
    %c0_7 = arith.constant 0 : index
    %8 = vector.load %arg6[%c0_6, %c0_7] : memref<8x256xf32, #tpu.memory_space<vmem>>, vector<8x256xf32>
    tpu.vector_store %arg6[%c0_6, %c0_7], %7 {strides = array<i32>} : memref<8x256xf32, #tpu.memory_space<vmem>>, vector<8x256xf32>,
    %c0_8 = arith.constant 0 : index
    %c0_9 = arith.constant 0 : index
    %9 = vector.load %arg7[%c0_8, %c0_9] : memref<8x256xf32, #tpu.memory_space<vmem>>, vector<8x256xf32>
    %cst_10 = arith.constant dense<0xFF800000> : vector<8x256xf32>
    %10 = vector.multi_reduction <maximumf>, %4, %cst_10 [0] : vector<4x8x256xf32> to vector<8x256xf32>
    %11 = arith.maximumf %9, %10 : vector<8x256xf32>
    %c0_11 = arith.constant 0 : index
    %c0_12 = arith.constant 0 : index
    %12 = vector.load %arg7[%c0_11, %c0_12] : memref<8x256xf32, #tpu.memory_space<vmem>>, vector<8x256xf32>
    tpu.vector_store %arg7[%c0_11, %c0_12], %11 {strides = array<i32>} : memref<8x256xf32, #tpu.memory_space<vmem>>, vector<8x256xf32>,
    %c0_i32_13 = arith.constant 0 : i32
    %13 = arith.cmpi eq, %arg1, %c0_i32_13 : i32
    %14 = arith.extui %13 : i1 to i32
    %c0_i32_14 = arith.constant 0 : i32
    %15 = arith.cmpi ne, %14, %c0_i32_14 : i32
    scf.if %15 {
      %c0_15 = arith.constant 0 : index
      %c0_16 = arith.constant 0 : index
      %16 = vector.load %arg6[%c0_15, %c0_16] : memref<8x256xf32, #tpu.memory_space<vmem>>, vector<8x256xf32>
      %cst_17 = arith.constant 2.500000e-01 : f32
      %17 = vector.broadcast %cst_17 : f32 to vector<8x256xf32>
      %18 = arith.mulf %16, %17 : vector<8x256xf32>
      %c0_18 = arith.constant 0 : index
      %c0_19 = arith.constant 0 : index
      %19 = vector.load %arg7[%c0_18, %c0_19] : memref<8x256xf32, #tpu.memory_space<vmem>>, vector<8x256xf32>
      %20 = tpu.concatenate %18, %19 in 0 : vector<8x256xf32>, vector<8x256xf32> -> vector<16x256xf32>
      %c0_20 = arith.constant 0 : index
      %c0_21 = arith.constant 0 : index
      %21 = vector.load %arg2[%c0_20, %c0_21] : memref<200x16xf32, #tpu.memory_space<vmem>>, vector<200x16xf32>
      %cst_22 = arith.constant dense<0.000000e+00> : vector<200x256xf32>
      %22 = tpu.matmul %21, %20, %cst_22 {dimension_numbers = #tpu.dot_dimension_numbers<[1], [0], [0], [1], [0, 0, 1, 1], [], []>} : vector<200x16xf32>, vector<16x256xf32>, vector<200x256xf32> -> vector<200x256xf32>
      %cst_23 = arith.constant 0.000000e+00 : f32
      %23 = vector.broadcast %cst_23 : f32 to vector<8x256xf32>
      %24 = vector.extract_strided_slice %22 {offsets = [0, 0], sizes = [8, 256], strides = [1, 1]} : vector<200x256xf32> to vector<8x256xf32>
      %c34_i32 = arith.constant 34 : i32
      %25 = tpu.dynamic_rotate %24 by %c34_i32 dim 1 : vector<8x256xf32>, i32 -> vector<8x256xf32>
      %c0_24 = arith.constant 0 : index
      %c0_25 = arith.constant 0 : index
      %26 = vector.load %arg3[%c0_24, %c0_25] : memref<25x256xf32, #tpu.memory_space<vmem>>, vector<1x256xf32>
      %27 = vector.broadcast %26 : vector<1x256xf32> to vector<8x256xf32>
      %28 = arith.mulf %25, %27 : vector<8x256xf32>
      %29 = arith.addf %23, %28 : vector<8x256xf32>
      %30 = vector.extract_strided_slice %22 {offsets = [8, 0], sizes = [8, 256], strides = [1, 1]} : vector<200x256xf32> to vector<8x256xf32>
      %c33_i32 = arith.constant 33 : i32
      %31 = tpu.dynamic_rotate %30 by %c33_i32 dim 1 : vector<8x256xf32>, i32 -> vector<8x256xf32>
      %c1 = arith.constant 1 : index
      %c0_26 = arith.constant 0 : index
      %32 = vector.load %arg3[%c1, %c0_26] : memref<25x256xf32, #tpu.memory_space<vmem>>, vector<1x256xf32>
      %33 = vector.broadcast %32 : vector<1x256xf32> to vector<8x256xf32>
      %34 = arith.mulf %31, %33 : vector<8x256xf32>
      %35 = arith.addf %29, %34 : vector<8x256xf32>
      %36 = vector.extract_strided_slice %22 {offsets = [16, 0], sizes = [8, 256], strides = [1, 1]} : vector<200x256xf32> to vector<8x256xf32>
      %c32_i32 = arith.constant 32 : i32
      %37 = tpu.dynamic_rotate %36 by %c32_i32 dim 1 : vector<8x256xf32>, i32 -> vector<8x256xf32>
      %c2 = arith.constant 2 : index
      %c0_27 = arith.constant 0 : index
      %38 = vector.load %arg3[%c2, %c0_27] : memref<25x256xf32, #tpu.memory_space<vmem>>, vector<1x256xf32>
      %39 = vector.broadcast %38 : vector<1x256xf32> to vector<8x256xf32>
      %40 = arith.mulf %37, %39 : vector<8x256xf32>
      %41 = arith.addf %35, %40 : vector<8x256xf32>
      %42 = vector.extract_strided_slice %22 {offsets = [24, 0], sizes = [8, 256], strides = [1, 1]} : vector<200x256xf32> to vector<8x256xf32>
      %c31_i32 = arith.constant 31 : i32
      %43 = tpu.dynamic_rotate %42 by %c31_i32 dim 1 : vector<8x256xf32>, i32 -> vector<8x256xf32>
      %c3 = arith.constant 3 : index
      %c0_28 = arith.constant 0 : index
      %44 = vector.load %arg3[%c3, %c0_28] : memref<25x256xf32, #tpu.memory_space<vmem>>, vector<1x256xf32>
      %45 = vector.broadcast %44 : vector<1x256xf32> to vector<8x256xf32>
      %46 = arith.mulf %43, %45 : vector<8x256xf32>
      %47 = arith.addf %41, %46 : vector<8x256xf32>
      %48 = vector.extract_strided_slice %22 {offsets = [32, 0], sizes = [8, 256], strides = [1, 1]} : vector<200x256xf32> to vector<8x256xf32>
      %c30_i32 = arith.constant 30 : i32
      %49 = tpu.dynamic_rotate %48 by %c30_i32 dim 1 : vector<8x256xf32>, i32 -> vector<8x256xf32>
      %c4 = arith.constant 4 : index
      %c0_29 = arith.constant 0 : index
      %50 = vector.load %arg3[%c4, %c0_29] : memref<25x256xf32, #tpu.memory_space<vmem>>, vector<1x256xf32>
      %51 = vector.broadcast %50 : vector<1x256xf32> to vector<8x256xf32>
      %52 = arith.mulf %49, %51 : vector<8x256xf32>
      %53 = arith.addf %47, %52 : vector<8x256xf32>
      %54 = vector.extract_strided_slice %22 {offsets = [40, 0], sizes = [8, 256], strides = [1, 1]} : vector<200x256xf32> to vector<8x256xf32>
      %c18_i32 = arith.constant 18 : i32
      %55 = tpu.dynamic_rotate %54 by %c18_i32 dim 1 : vector<8x256xf32>, i32 -> vector<8x256xf32>
      %c5 = arith.constant 5 : index
      %c0_30 = arith.constant 0 : index
      %56 = vector.load %arg3[%c5, %c0_30] : memref<25x256xf32, #tpu.memory_space<vmem>>, vector<1x256xf32>
      %57 = vector.broadcast %56 : vector<1x256xf32> to vector<8x256xf32>
      %58 = arith.mulf %55, %57 : vector<8x256xf32>
      %59 = arith.addf %53, %58 : vector<8x256xf32>
      %60 = vector.extract_strided_slice %22 {offsets = [48, 0], sizes = [8, 256], strides = [1, 1]} : vector<200x256xf32> to vector<8x256xf32>
      %c17_i32 = arith.constant 17 : i32
      %61 = tpu.dynamic_rotate %60 by %c17_i32 dim 1 : vector<8x256xf32>, i32 -> vector<8x256xf32>
      %c6 = arith.constant 6 : index
      %c0_31 = arith.constant 0 : index
      %62 = vector.load %arg3[%c6, %c0_31] : memref<25x256xf32, #tpu.memory_space<vmem>>, vector<1x256xf32>
      %63 = vector.broadcast %62 : vector<1x256xf32> to vector<8x256xf32>
      %64 = arith.mulf %61, %63 : vector<8x256xf32>
      %65 = arith.addf %59, %64 : vector<8x256xf32>
      %66 = vector.extract_strided_slice %22 {offsets = [56, 0], sizes = [8, 256], strides = [1, 1]} : vector<200x256xf32> to vector<8x256xf32>
      %c16_i32 = arith.constant 16 : i32
      %67 = tpu.dynamic_rotate %66 by %c16_i32 dim 1 : vector<8x256xf32>, i32 -> vector<8x256xf32>
      %c7 = arith.constant 7 : index
      %c0_32 = arith.constant 0 : index
      %68 = vector.load %arg3[%c7, %c0_32] : memref<25x256xf32, #tpu.memory_space<vmem>>, vector<1x256xf32>
      %69 = vector.broadcast %68 : vector<1x256xf32> to vector<8x256xf32>
      %70 = arith.mulf %67, %69 : vector<8x256xf32>
      %71 = arith.addf %65, %70 : vector<8x256xf32>
      %72 = vector.extract_strided_slice %22 {offsets = [64, 0], sizes = [8, 256], strides = [1, 1]} : vector<200x256xf32> to vector<8x256xf32>
      %c15_i32 = arith.constant 15 : i32
      %73 = tpu.dynamic_rotate %72 by %c15_i32 dim 1 : vector<8x256xf32>, i32 -> vector<8x256xf32>
      %c8 = arith.constant 8 : index
      %c0_33 = arith.constant 0 : index
      %74 = vector.load %arg3[%c8, %c0_33] : memref<25x256xf32, #tpu.memory_space<vmem>>, vector<1x256xf32>
      %75 = vector.broadcast %74 : vector<1x256xf32> to vector<8x256xf32>
      %76 = arith.mulf %73, %75 : vector<8x256xf32>
      %77 = arith.addf %71, %76 : vector<8x256xf32>
      %78 = vector.extract_strided_slice %22 {offsets = [72, 0], sizes = [8, 256], strides = [1, 1]} : vector<200x256xf32> to vector<8x256xf32>
      %c14_i32 = arith.constant 14 : i32
      %79 = tpu.dynamic_rotate %78 by %c14_i32 dim 1 : vector<8x256xf32>, i32 -> vector<8x256xf32>
      %c9 = arith.constant 9 : index
      %c0_34 = arith.constant 0 : index
      %80 = vector.load %arg3[%c9, %c0_34] : memref<25x256xf32, #tpu.memory_space<vmem>>, vector<1x256xf32>
      %81 = vector.broadcast %80 : vector<1x256xf32> to vector<8x256xf32>
      %82 = arith.mulf %79, %81 : vector<8x256xf32>
      %83 = arith.addf %77, %82 : vector<8x256xf32>
      %84 = vector.extract_strided_slice %22 {offsets = [80, 0], sizes = [8, 256], strides = [1, 1]} : vector<200x256xf32> to vector<8x256xf32>
      %c2_i32 = arith.constant 2 : i32
      %85 = tpu.dynamic_rotate %84 by %c2_i32 dim 1 : vector<8x256xf32>, i32 -> vector<8x256xf32>
      %c10 = arith.constant 10 : index
      %c0_35 = arith.constant 0 : index
      %86 = vector.load %arg3[%c10, %c0_35] : memref<25x256xf32, #tpu.memory_space<vmem>>, vector<1x256xf32>
      %87 = vector.broadcast %86 : vector<1x256xf32> to vector<8x256xf32>
      %88 = arith.mulf %85, %87 : vector<8x256xf32>
      %89 = arith.addf %83, %88 : vector<8x256xf32>
      %90 = vector.extract_strided_slice %22 {offsets = [88, 0], sizes = [8, 256], strides = [1, 1]} : vector<200x256xf32> to vector<8x256xf32>
      %c1_i32 = arith.constant 1 : i32
      %91 = tpu.dynamic_rotate %90 by %c1_i32 dim 1 : vector<8x256xf32>, i32 -> vector<8x256xf32>
      %c11 = arith.constant 11 : index
      %c0_36 = arith.constant 0 : index
      %92 = vector.load %arg3[%c11, %c0_36] : memref<25x256xf32, #tpu.memory_space<vmem>>, vector<1x256xf32>
      %93 = vector.broadcast %92 : vector<1x256xf32> to vector<8x256xf32>
      %94 = arith.mulf %91, %93 : vector<8x256xf32>
      %95 = arith.addf %89, %94 : vector<8x256xf32>
      %96 = vector.extract_strided_slice %22 {offsets = [96, 0], sizes = [8, 256], strides = [1, 1]} : vector<200x256xf32> to vector<8x256xf32>
      %97 = arith.addf %95, %96 : vector<8x256xf32>
      %98 = vector.extract_strided_slice %22 {offsets = [104, 0], sizes = [8, 256], strides = [1, 1]} : vector<200x256xf32> to vector<8x256xf32>
      %c255_i32 = arith.constant 255 : i32
      %99 = tpu.dynamic_rotate %98 by %c255_i32 dim 1 : vector<8x256xf32>, i32 -> vector<8x256xf32>
      %c13 = arith.constant 13 : index
      %c0_37 = arith.constant 0 : index
      %100 = vector.load %arg3[%c13, %c0_37] : memref<25x256xf32, #tpu.memory_space<vmem>>, vector<1x256xf32>
      %101 = vector.broadcast %100 : vector<1x256xf32> to vector<8x256xf32>
      %102 = arith.mulf %99, %101 : vector<8x256xf32>
      %103 = arith.addf %97, %102 : vector<8x256xf32>
      %104 = vector.extract_strided_slice %22 {offsets = [112, 0], sizes = [8, 256], strides = [1, 1]} : vector<200x256xf32> to vector<8x256xf32>
      %c254_i32 = arith.constant 254 : i32
      %105 = tpu.dynamic_rotate %104 by %c254_i32 dim 1 : vector<8x256xf32>, i32 -> vector<8x256xf32>
      %c14 = arith.constant 14 : index
      %c0_38 = arith.constant 0 : index
      %106 = vector.load %arg3[%c14, %c0_38] : memref<25x256xf32, #tpu.memory_space<vmem>>, vector<1x256xf32>
      %107 = vector.broadcast %106 : vector<1x256xf32> to vector<8x256xf32>
      %108 = arith.mulf %105, %107 : vector<8x256xf32>
      %109 = arith.addf %103, %108 : vector<8x256xf32>
      %110 = vector.extract_strided_slice %22 {offsets = [120, 0], sizes = [8, 256], strides = [1, 1]} : vector<200x256xf32> to vector<8x256xf32>
      %c242_i32 = arith.constant 242 : i32
      %111 = tpu.dynamic_rotate %110 by %c242_i32 dim 1 : vector<8x256xf32>, i32 -> vector<8x256xf32>
      %c15 = arith.constant 15 : index
      %c0_39 = arith.constant 0 : index
      %112 = vector.load %arg3[%c15, %c0_39] : memref<25x256xf32, #tpu.memory_space<vmem>>, vector<1x256xf32>
      %113 = vector.broadcast %112 : vector<1x256xf32> to vector<8x256xf32>
      %114 = arith.mulf %111, %113 : vector<8x256xf32>
      %115 = arith.addf %109, %114 : vector<8x256xf32>
      %116 = vector.extract_strided_slice %22 {offsets = [128, 0], sizes = [8, 256], strides = [1, 1]} : vector<200x256xf32> to vector<8x256xf32>
      %c241_i32 = arith.constant 241 : i32
      %117 = tpu.dynamic_rotate %116 by %c241_i32 dim 1 : vector<8x256xf32>, i32 -> vector<8x256xf32>
      %c16 = arith.constant 16 : index
      %c0_40 = arith.constant 0 : index
      %118 = vector.load %arg3[%c16, %c0_40] : memref<25x256xf32, #tpu.memory_space<vmem>>, vector<1x256xf32>
      %119 = vector.broadcast %118 : vector<1x256xf32> to vector<8x256xf32>
      %120 = arith.mulf %117, %119 : vector<8x256xf32>
      %121 = arith.addf %115, %120 : vector<8x256xf32>
      %122 = vector.extract_strided_slice %22 {offsets = [136, 0], sizes = [8, 256], strides = [1, 1]} : vector<200x256xf32> to vector<8x256xf32>
      %c240_i32 = arith.constant 240 : i32
      %123 = tpu.dynamic_rotate %122 by %c240_i32 dim 1 : vector<8x256xf32>, i32 -> vector<8x256xf32>
      %c17 = arith.constant 17 : index
      %c0_41 = arith.constant 0 : index
      %124 = vector.load %arg3[%c17, %c0_41] : memref<25x256xf32, #tpu.memory_space<vmem>>, vector<1x256xf32>
      %125 = vector.broadcast %124 : vector<1x256xf32> to vector<8x256xf32>
      %126 = arith.mulf %123, %125 : vector<8x256xf32>
      %127 = arith.addf %121, %126 : vector<8x256xf32>
      %128 = vector.extract_strided_slice %22 {offsets = [144, 0], sizes = [8, 256], strides = [1, 1]} : vector<200x256xf32> to vector<8x256xf32>
      %c239_i32 = arith.constant 239 : i32
      %129 = tpu.dynamic_rotate %128 by %c239_i32 dim 1 : vector<8x256xf32>, i32 -> vector<8x256xf32>
      %c18 = arith.constant 18 : index
      %c0_42 = arith.constant 0 : index
      %130 = vector.load %arg3[%c18, %c0_42] : memref<25x256xf32, #tpu.memory_space<vmem>>, vector<1x256xf32>
      %131 = vector.broadcast %130 : vector<1x256xf32> to vector<8x256xf32>
      %132 = arith.mulf %129, %131 : vector<8x256xf32>
      %133 = arith.addf %127, %132 : vector<8x256xf32>
      %134 = vector.extract_strided_slice %22 {offsets = [152, 0], sizes = [8, 256], strides = [1, 1]} : vector<200x256xf32> to vector<8x256xf32>
      %c238_i32 = arith.constant 238 : i32
      %135 = tpu.dynamic_rotate %134 by %c238_i32 dim 1 : vector<8x256xf32>, i32 -> vector<8x256xf32>
      %c19 = arith.constant 19 : index
      %c0_43 = arith.constant 0 : index
      %136 = vector.load %arg3[%c19, %c0_43] : memref<25x256xf32, #tpu.memory_space<vmem>>, vector<1x256xf32>
      %137 = vector.broadcast %136 : vector<1x256xf32> to vector<8x256xf32>
      %138 = arith.mulf %135, %137 : vector<8x256xf32>
      %139 = arith.addf %133, %138 : vector<8x256xf32>
      %140 = vector.extract_strided_slice %22 {offsets = [160, 0], sizes = [8, 256], strides = [1, 1]} : vector<200x256xf32> to vector<8x256xf32>
      %c226_i32 = arith.constant 226 : i32
      %141 = tpu.dynamic_rotate %140 by %c226_i32 dim 1 : vector<8x256xf32>, i32 -> vector<8x256xf32>
      %c20 = arith.constant 20 : index
      %c0_44 = arith.constant 0 : index
      %142 = vector.load %arg3[%c20, %c0_44] : memref<25x256xf32, #tpu.memory_space<vmem>>, vector<1x256xf32>
      %143 = vector.broadcast %142 : vector<1x256xf32> to vector<8x256xf32>
      %144 = arith.mulf %141, %143 : vector<8x256xf32>
      %145 = arith.addf %139, %144 : vector<8x256xf32>
      %146 = vector.extract_strided_slice %22 {offsets = [168, 0], sizes = [8, 256], strides = [1, 1]} : vector<200x256xf32> to vector<8x256xf32>
      %c225_i32 = arith.constant 225 : i32
      %147 = tpu.dynamic_rotate %146 by %c225_i32 dim 1 : vector<8x256xf32>, i32 -> vector<8x256xf32>
      %c21 = arith.constant 21 : index
      %c0_45 = arith.constant 0 : index
      %148 = vector.load %arg3[%c21, %c0_45] : memref<25x256xf32, #tpu.memory_space<vmem>>, vector<1x256xf32>
      %149 = vector.broadcast %148 : vector<1x256xf32> to vector<8x256xf32>
      %150 = arith.mulf %147, %149 : vector<8x256xf32>
      %151 = arith.addf %145, %150 : vector<8x256xf32>
      %152 = vector.extract_strided_slice %22 {offsets = [176, 0], sizes = [8, 256], strides = [1, 1]} : vector<200x256xf32> to vector<8x256xf32>
      %c224_i32 = arith.constant 224 : i32
      %153 = tpu.dynamic_rotate %152 by %c224_i32 dim 1 : vector<8x256xf32>, i32 -> vector<8x256xf32>
      %c22 = arith.constant 22 : index
      %c0_46 = arith.constant 0 : index
      %154 = vector.load %arg3[%c22, %c0_46] : memref<25x256xf32, #tpu.memory_space<vmem>>, vector<1x256xf32>
      %155 = vector.broadcast %154 : vector<1x256xf32> to vector<8x256xf32>
      %156 = arith.mulf %153, %155 : vector<8x256xf32>
      %157 = arith.addf %151, %156 : vector<8x256xf32>
      %158 = vector.extract_strided_slice %22 {offsets = [184, 0], sizes = [8, 256], strides = [1, 1]} : vector<200x256xf32> to vector<8x256xf32>
      %c223_i32 = arith.constant 223 : i32
      %159 = tpu.dynamic_rotate %158 by %c223_i32 dim 1 : vector<8x256xf32>, i32 -> vector<8x256xf32>
      %c23 = arith.constant 23 : index
      %c0_47 = arith.constant 0 : index
      %160 = vector.load %arg3[%c23, %c0_47] : memref<25x256xf32, #tpu.memory_space<vmem>>, vector<1x256xf32>
      %161 = vector.broadcast %160 : vector<1x256xf32> to vector<8x256xf32>
      %162 = arith.mulf %159, %161 : vector<8x256xf32>
      %163 = arith.addf %157, %162 : vector<8x256xf32>
      %164 = vector.extract_strided_slice %22 {offsets = [192, 0], sizes = [8, 256], strides = [1, 1]} : vector<200x256xf32> to vector<8x256xf32>
      %c222_i32 = arith.constant 222 : i32
      %165 = tpu.dynamic_rotate %164 by %c222_i32 dim 1 : vector<8x256xf32>, i32 -> vector<8x256xf32>
      %c24 = arith.constant 24 : index
      %c0_48 = arith.constant 0 : index
      %166 = vector.load %arg3[%c24, %c0_48] : memref<25x256xf32, #tpu.memory_space<vmem>>, vector<1x256xf32>
      %167 = vector.broadcast %166 : vector<1x256xf32> to vector<8x256xf32>
      %168 = arith.mulf %165, %167 : vector<8x256xf32>
      %169 = arith.addf %163, %168 : vector<8x256xf32>
      %170 = arith.negf %169 : vector<8x256xf32>
      %171 = math.exp %170 : vector<8x256xf32>
      %cst_49 = arith.constant 1.000000e+00 : f32
      %172 = vector.broadcast %cst_49 : f32 to vector<8x256xf32>
      %173 = arith.addf %172, %171 : vector<8x256xf32>
      %174 = arith.divf %172, %173 : vector<8x256xf32>
      %c0_50 = arith.constant 0 : index
      %c0_51 = arith.constant 0 : index
      %c0_52 = arith.constant 0 : index
      %175 = vector.load %arg5[%c0_50, %c0_51, %c0_52] : memref<1x8x256xf32, #tpu.memory_space<vmem>>, vector<1x8x256xf32>
      %176 = vector.shape_cast %175 : vector<1x8x256xf32> to vector<8x256xf32>
      %177 = vector.shape_cast %174 : vector<8x256xf32> to vector<1x8x256xf32>
      tpu.vector_store %arg5[%c0_50, %c0_51, %c0_52], %177 {strides = array<i32>} : memref<1x8x256xf32, #tpu.memory_space<vmem>>, vector<1x8x256xf32>,
    } else {
    }
    return
  }
  func.func @transform_0(%arg0: i32, %arg1: i32) -> (i32, i32) {
    %c0_i32 = arith.constant 0 : i32
    %c0_i32_0 = arith.constant 0 : i32
    %c0_i32_1 = arith.constant 0 : i32
    return %c0_i32, %c0_i32_0 : i32, i32
  }
  func.func @transform_1(%arg0: i32, %arg1: i32) -> (i32, i32) {
    %c0_i32 = arith.constant 0 : i32
    %c0_i32_0 = arith.constant 0 : i32
    %c0_i32_1 = arith.constant 0 : i32
    return %c0_i32, %c0_i32_0 : i32, i32
  }
  func.func @transform_2(%arg0: i32, %arg1: i32) -> (i32, i32, i32, i32) {
    %c0_i32 = arith.constant 0 : i32
    %c0_i32_0 = arith.constant 0 : i32
    %c0_i32_1 = arith.constant 0 : i32
    return %arg0, %arg1, %c0_i32, %c0_i32_0 : i32, i32, i32, i32
  }
  func.func @transform_3(%arg0: i32, %arg1: i32) -> (i32, i32, i32) {
    %c0_i32 = arith.constant 0 : i32
    %c0_i32_0 = arith.constant 0 : i32
    %c0_i32_1 = arith.constant 0 : i32
    return %arg0, %c0_i32, %c0_i32_0 : i32, i32, i32
  }
}

</mosaic_0001>

<llo_original>
// kernel: tpu_custom_call.1
$region0: #{tpu_custom_call.1}
  #allocation0 [shape = 'u32[]', space=smem, size = 0x4, offset = 0x4, fixed_abs, tag = 'smem constant byte address 0x4 - core index']
  #allocation1 [shape = 'u32[72,128]{1,0:T(1,128)}', space=vmem, size = 0x9000, scoped, tag = 'internal scratch']
  #allocation2 [shape = 'f32[8,256]{1,0:T(8,128)}', space=vmem, size = 0x2000, scoped, tag = 'scratch operand']
  #allocation3 [shape = 'f32[8,256]{1,0:T(8,128)}', space=vmem, size = 0x2000, scoped, tag = 'scratch operand']
  %s0 = inlined_call_operand.vmem [shape: f32[200,16], index: 0, kind: input, shape index: {}]
  %s1 = inlined_call_operand.vmem [shape: f32[25,256], index: 1, kind: input, shape index: {}]
  %s2 = inlined_call_operand.vmem [shape: f32[2,4,8,256], index: 2, kind: input, shape index: {}]
  %s3 = inlined_call_operand.hbm [shape: f32[2,8,256], index: 3, kind: output, shape index: {}]
  %s4 = sld [smem:[#allocation0]]
  $region53: #{tpu_custom_call.1} parent=0
    _
  %s6 = ssub.s32 1, %s4
  %s7 = scalar_select 0, %s6, %s4
  $region1: #{tpu_custom_call.1} parent=0
    #allocation4 [shape = 'u8[16384]{0}', space=vmem, size = 0x4000, scoped, tag = 'output window, operand 0']
    #allocation5 [shape = 's32[2]{0}', space=sflag, size = 0x8, scoped, tag = 'scoped memory for tpu_custom_call.1']
    %8 = vsyncpa [#allocation5], 0
    %s9 = scalar_lea.sflag [#allocation5], 1
    %10 = vsyncpa %s9, 0
    loop: start=0, step=1, limit=4
    $region2: #{tpu_custom_call.1} parent=1 // loop_pre_header
      _
    $region3: #{tpu_custom_call.1} parent=1 // loop_header
      %s12 = sphi 0, %s16
      %p13 = scmp.ge.s32.totalorder %s12, 4
      %s19 = sphi 0, %s31
      %s20 = sphi 0, %s27
      %s21 = sphi 0, %s19
      %s22 = sphi 0, %s20
      %s23 = sphi 0, %s21
      %s24 = sphi 0, %s22
      %s32 = sphi 0, %s32
      %s34 = sphi 0, %s32
      %s35 = sphi 0, %s34
      %s49 = sphi 0, %s35
      %s53 = sphi 0, %s53
      %s55 = sphi 0, %s53
      %s56 = sphi 0, %s55
      %s70 = sphi 0, %s56
      %s78 = sphi 0, %s80
      %s81 = sphi 0, %s78
      %s82 = sphi 0, %s81
      %s98 = sphi 0, %s82
      %s104 = sphi 0, %s106
      %s107 = sphi 0, %s104
      %s108 = sphi 0, %s107
      %s124 = sphi 0, %s108
    $region4: #{tpu_custom_call.1} parent=1 // loop_header_branch
      %15 = sbr.rel (%p13) target = $region8
    $region5: #{tpu_custom_call.1} parent=1 // loop_body
      %s17 = ssub.s32 %s12, 1
      %s18 = ssub.s32 %s12, 2
      %s25 = sadd.s32 1, %s20
      %p26 = scmp.ge.s32.totalorder %s25, 1
      %s27 = scalar_select %p26, 0, %s25
      %s28 = sadd.s32 1, %s19
      %s29 = scalar_select %p26, %s28, %s19
      %p30 = scmp.ge.s32.totalorder %s29, 2
      %s31 = scalar_select %p30, 0, %s29
      %s33 = sadd.s32 %s32, 1
      %p36 = scmp.eq.s32.totalorder %s12, 1
      %p37 = scmp.ne.s32.totalorder %s32, %s34
      %p38 = scmp.eq.s32.totalorder %s12, 0
      %p39 = por %p37, %p38
      %p40 = scmp.ne.s32.totalorder %s32, %s34
      %p41 = scmp.eq.s32.totalorder %s17, 1
      %p42 = por %p40, %p41
      %p43 = scmp.ne.s32.totalorder %s34, %s35
      %p44 = scmp.eq.s32.totalorder %s17, 0
      %p45 = por %p43, %p44
      %p46 = scmp.ne.s32.totalorder %s34, %s35
      %p47 = scmp.eq.s32.totalorder %s18, 1
      %p48 = por %p46, %p47
      %p50 = scmp.ne.s32.totalorder %s35, %s49
      %p51 = scmp.eq.s32.totalorder %s18, 0
      %p52 = por %p50, %p51
      %s54 = sadd.s32 %s53, 1
      %p57 = scmp.eq.s32.totalorder %s12, 1
      %p58 = scmp.ne.s32.totalorder %s53, %s55
      %p59 = scmp.eq.s32.totalorder %s12, 0
      %p60 = por %p58, %p59
      %p61 = scmp.ne.s32.totalorder %s53, %s55
      %p62 = scmp.eq.s32.totalorder %s17, 1
      %p63 = por %p61, %p62
      %p64 = scmp.ne.s32.totalorder %s55, %s56
      %p65 = scmp.eq.s32.totalorder %s17, 0
      %p66 = por %p64, %p65
      %p67 = scmp.ne.s32.totalorder %s55, %s56
      %p68 = scmp.eq.s32.totalorder %s18, 1
      %p69 = por %p67, %p68
      %p71 = scmp.ne.s32.totalorder %s56, %s70
      %p72 = scmp.eq.s32.totalorder %s18, 0
      %p73 = por %p71, %p72
      %s74 = ssub.s32 %s19, %s31
      %s75 = ssub.s32 %s20, %s27
      %s76 = sor.u32 %s74, %s75
      %p77 = scmp.eq.s32.totalorder %s76, 0
      %s79 = sadd.s32 %s78, 1
      %s80 = scalar_select %p77, %s78, %s79
      %p83 = pneg %p77
      %p84 = scmp.eq.s32.totalorder %s12, 1
      %p85 = por %p83, %p84
      %p86 = scmp.ne.s32.totalorder %s78, %s81
      %p87 = scmp.eq.s32.totalorder %s12, 0
      %p88 = por %p86, %p87
      %p89 = scmp.ne.s32.totalorder %s78, %s81
      %p90 = scmp.eq.s32.totalorder %s17, 1
      %p91 = por %p89, %p90
      %p92 = scmp.ne.s32.totalorder %s81, %s82
      %p93 = scmp.eq.s32.totalorder %s17, 0
      %p94 = por %p92, %p93
      %p95 = scmp.ne.s32.totalorder %s81, %s82
      %p96 = scmp.eq.s32.totalorder %s18, 1
      %p97 = por %p95, %p96
      %p99 = scmp.ne.s32.totalorder %s82, %s98
      %p100 = scmp.eq.s32.totalorder %s18, 0
      %p101 = por %p99, %p100
      %s102 = ssub.s32 %s19, %s31
      %p103 = scmp.eq.s32.totalorder %s102, 0
      %s105 = sadd.s32 %s104, 1
      %s106 = scalar_select %p103, %s104, %s105
      %p109 = pneg %p103
      %p110 = scmp.eq.s32.totalorder %s12, 1
      %p111 = por %p109, %p110
      %p112 = scmp.ne.s32.totalorder %s104, %s107
      %p113 = scmp.eq.s32.totalorder %s12, 0
      %p114 = por %p112, %p113
      %p115 = scmp.ne.s32.totalorder %s104, %s107
      %p116 = scmp.eq.s32.totalorder %s17, 1
      %p117 = por %p115, %p116
      %p118 = scmp.ne.s32.totalorder %s107, %s108
      %p119 = scmp.eq.s32.totalorder %s17, 0
      %p120 = por %p118, %p119
      %p121 = scmp.ne.s32.totalorder %s107, %s108
      %p122 = scmp.eq.s32.totalorder %s18, 1
      %p123 = por %p121, %p122
      %p125 = scmp.ne.s32.totalorder %s108, %s124
      %p126 = scmp.eq.s32.totalorder %s18, 0
      %p127 = por %p125, %p126
      %p128 = scmp.le.s32.totalorder 1, %s12
      %p129 = scmp.lt.s32.totalorder %s12, 3
      %p130 = pnand %p128, %p129
      %p131 = pneg %p130
      // Predicated region
      $region9: #{tpu_custom_call.1} parent=5 // pred_check
        _
      $region10: #{tpu_custom_call.1} parent=5 // pred_check_branch
        %133 = sbr.rel (%p130) target = $region12
      $region11: #{tpu_custom_call.1} parent=5 // pred_region
        %s134 = ssub.s32 %s12, 1
        // Predicated region
        $region13: #{tpu_custom_call.1} parent=11 // pred_check
          %p135 = pneg %p45
        $region14: #{tpu_custom_call.1} parent=11 // pred_check_branch
          %137 = sbr.rel (%p135) target = $region16
        $region15: #{tpu_custom_call.1} parent=11 // pred_region
          _
        $region16: #{tpu_custom_call.1} parent=11 // pred_fallthru
          _
        // Predicated region
        $region17: #{tpu_custom_call.1} parent=11 // pred_check
          %p138 = pneg %p66
        $region18: #{tpu_custom_call.1} parent=11 // pred_check_branch
          %140 = sbr.rel (%p138) target = $region20
        $region19: #{tpu_custom_call.1} parent=11 // pred_region
          _
        $region20: #{tpu_custom_call.1} parent=11 // pred_fallthru
          _
      $region12: #{tpu_custom_call.1} parent=5 // pred_fallthru
        _
      %p141 = scmp.lt.s32.totalorder %s12, 2
      // Predicated region
      $region21: #{tpu_custom_call.1} parent=5 // pred_check
        %p142 = pneg %p141
      $region22: #{tpu_custom_call.1} parent=5 // pred_check_branch
        %144 = sbr.rel (%p142) target = $region24
      $region23: #{tpu_custom_call.1} parent=5 // pred_region
        // Predicated region
        $region25: #{tpu_custom_call.1} parent=23 // pred_check
          %p145 = pneg %p88
        $region26: #{tpu_custom_call.1} parent=23 // pred_check_branch
          %147 = sbr.rel (%p145) target = $region28
        $region27: #{tpu_custom_call.1} parent=23 // pred_region
          %s148 = smul.u32 4, %s20
          %p149 = scmp.lt.s32.totalorder %s19, 1
          %s150 = scalar_select %p149, %s19, 1
          %p151 = scmp.lt.s32.totalorder %s148, 3
          %s152 = scalar_select %p151, %s148, 3
          %s153 = smul.addr %s152, 2
          %s154 = smul.addr %s150, 8
          %s155 = sadd.s32 %s153, %s154
          %s156 = smul.addr %s155, 8
          %s157 = scalar_lea.vmem %s2, %s156
          %s158 = smul.u32 4, %s20
        $region28: #{tpu_custom_call.1} parent=23 // pred_fallthru
          _
      $region24: #{tpu_custom_call.1} parent=5 // pred_fallthru
        _
      %p159 = scmp.le.s32.totalorder 1, %s12
      %p160 = scmp.lt.s32.totalorder %s12, 3
      %p161 = pnand %p159, %p160
      %p162 = pneg %p161
      // Predicated region
      $region29: #{tpu_custom_call.1} parent=5 // pred_check
        _
      $region30: #{tpu_custom_call.1} parent=5 // pred_check_branch
        %164 = sbr.rel (%p161) target = $region32
      $region31: #{tpu_custom_call.1} parent=5 // pred_region
        %s165 = ssub.s32 %s12, 1
        %p166 = pneg %p45
        %p167 = pneg %p42
        %p168 = pneg %p66
        %p169 = pneg %p63
        %s170 = smul.u32 4, %s22
        %p171 = scmp.lt.s32.totalorder %s21, 1
        %s172 = scalar_select %p171, %s21, 1
        %p173 = scmp.lt.s32.totalorder %s170, 3
        %s174 = scalar_select %p173, %s170, 3
        %s175 = smul.addr %s174, 2
        %s176 = smul.addr %s172, 8
        %s177 = sadd.s32 %s175, %s176
        %s178 = smul.addr %s177, 8
        %s179 = scalar_lea.vmem %s2, %s178
        %p180 = pneg %p94
        %p181 = pneg %p91
        %p182 = pneg %p120
        %p183 = pneg %p117
        %s184 = sand.u32 %s107, 1
        %s185 = scalar_lea.sflag [#allocation5], %s184
        %s186 = sand.u32 %s107, 1
        %s187 = smul.addr %s186, 16
        %s188 = scalar_lea.vmem [#allocation4], %s187
        %s189 = smul.u32 4, %s22
        %p190 = scmp.lt.s32.totalorder %s21, 1
        %s191 = scalar_select %p190, %s21, 1
        %p192 = scmp.lt.s32.totalorder %s189, 3
        %s193 = scalar_select %p192, %s189, 3
        %s194 = smul.addr %s193, 2
        %s195 = smul.addr %s191, 8
        %s196 = sadd.s32 %s194, %s195
        %s197 = smul.addr %s196, 8
        %s198 = scalar_lea.vmem %s2, %s197
        %s199 = smul.u32 4, %s22
        %p200 = scmp.eq.s32.totalorder %s22, 0
        // Predicated region
        $region33: #{tpu_custom_call.1} parent=31 // pred_check
          %p201 = pneg %p200
        $region34: #{tpu_custom_call.1} parent=31 // pred_check_branch
          %203 = sbr.rel (%p201) target = $region36
        $region35: #{tpu_custom_call.1} parent=31 // pred_region
          %204 = vst [vmem:[#allocation2] sm:$0xff] 0.0
          %205 = vst [vmem:[#allocation2 + $0x8] sm:$0xff] 0.0
          %206 = vst [vmem:[#allocation3] sm:$0xff] -inf
          %207 = vst [vmem:[#allocation3 + $0x8] sm:$0xff] -inf
        $region36: #{tpu_custom_call.1} parent=31 // pred_fallthru
          _
        %v208 = vld [vmem:[%s198] sm:$0xff]
        %v209 = vld [vmem:[%s198 + $0x8] sm:$0xff]
        %v210 = vld [vmem:[%s198 + $0x10] sm:$0xff]
        %v211 = vld [vmem:[%s198 + $0x18] sm:$0xff]
        %v212 = vld [vmem:[%s198 + $0x20] sm:$0xff]
        %v213 = vld [vmem:[%s198 + $0x28] sm:$0xff]
        %v214 = vld [vmem:[%s198 + $0x30] sm:$0xff]
        %v215 = vld [vmem:[%s198 + $0x38] sm:$0xff]
        %v216 = vld [vmem:[#allocation2] sm:$0xff]
        %v217 = vld [vmem:[#allocation2 + $0x8] sm:$0xff]
        %v218 = vadd.f32 %v208, %v210
        %v219 = vadd.f32 %v218, %v212
        %v220 = vadd.f32 %v219, %v214
        %v221 = vadd.f32 %v209, %v211
        %v222 = vadd.f32 %v221, %v213
        %v223 = vadd.f32 %v222, %v215
        %v224 = vadd.f32 %v216, %v220
        %v225 = vadd.f32 %v217, %v223
        %226 = vst [vmem:[#allocation2] sm:$0xff] %v224
        %227 = vst [vmem:[#allocation2 + $0x8] sm:$0xff] %v225
        %v228 = vld [vmem:[#allocation3] sm:$0xff]
        %v229 = vld [vmem:[#allocation3 + $0x8] sm:$0xff]
        %v230 = vmax.f32 %v208, %v212
        %v231 = vmax.f32 %v210, %v214
        %v232 = vmax.f32 %v230, %v231
        %v233 = vmax.f32 %v209, %v213
        %v234 = vmax.f32 %v211, %v215
        %v235 = vmax.f32 %v233, %v234
        %v236 = vmax.f32 %v228, %v232
        %v237 = vmax.f32 %v229, %v235
        %238 = vst [vmem:[#allocation3] sm:$0xff] %v236
        %239 = vst [vmem:[#allocation3 + $0x8] sm:$0xff] %v237
        // Predicated region
        $region37: #{tpu_custom_call.1} parent=31 // pred_check
          %p240 = pneg %p200
        $region38: #{tpu_custom_call.1} parent=31 // pred_check_branch
          %242 = sbr.rel (%p240) target = $region40
        $region39: #{tpu_custom_call.1} parent=31 // pred_region
          %v243 = vld [vmem:[#allocation2] sm:$0xff]
          %v244 = vld [vmem:[#allocation2 + $0x8] sm:$0xff]
          %v245 = vmul.f32 %v243, 0.25
          %v246 = vmul.f32 %v244, 0.25
          %v247 = vld [vmem:[#allocation3] sm:$0xff]
          %v248 = vld [vmem:[#allocation3 + $0x8] sm:$0xff]
          %v249 = vld [vmem:[%s0] sm:$0xff]
          %v250 = vld [vmem:[%s0 + $0x8] sm:$0xff]
          %v251 = vld [vmem:[%s0 + $0x10] sm:$0xff]
          %v252 = vld [vmem:[%s0 + $0x18] sm:$0xff]
          %v253 = vld [vmem:[%s0 + $0x20] sm:$0xff]
          %v254 = vld [vmem:[%s0 + $0x28] sm:$0xff]
          %v255 = vld [vmem:[%s0 + $0x30] sm:$0xff]
          %v256 = vld [vmem:[%s0 + $0x38] sm:$0xff]
          %v257 = vld [vmem:[%s0 + $0x40] sm:$0xff]
          %v258 = vld [vmem:[%s0 + $0x48] sm:$0xff]
          %v259 = vld [vmem:[%s0 + $0x50] sm:$0xff]
          %v260 = vld [vmem:[%s0 + $0x58] sm:$0xff]
          %v261 = vld [vmem:[%s0 + $0x60] sm:$0xff]
          %v262 = vld [vmem:[%s0 + $0x68] sm:$0xff]
          %v263 = vld [vmem:[%s0 + $0x70] sm:$0xff]
          %v264 = vld [vmem:[%s0 + $0x78] sm:$0xff]
          %v265 = vld [vmem:[%s0 + $0x80] sm:$0xff]
          %v266 = vld [vmem:[%s0 + $0x88] sm:$0xff]
          %v267 = vld [vmem:[%s0 + $0x90] sm:$0xff]
          %v268 = vld [vmem:[%s0 + $0x98] sm:$0xff]
          %v269 = vld [vmem:[%s0 + $0xa0] sm:$0xff]
          %v270 = vld [vmem:[%s0 + $0xa8] sm:$0xff]
          %v271 = vld [vmem:[%s0 + $0xb0] sm:$0xff]
          %v272 = vld [vmem:[%s0 + $0xb8] sm:$0xff]
          %v273 = vld [vmem:[%s0 + $0xc0] sm:$0xff]
          %vm274 = vcmask 130048
          %v276 = vsel %vm274, %v249, 0
          %v279 = vsel %vm274, %v250, 0
          %v282 = vsel %vm274, %v251, 0
          %v285 = vsel %vm274, %v252, 0
          %v288 = vsel %vm274, %v253, 0
          %v291 = vsel %vm274, %v254, 0
          %v294 = vsel %vm274, %v255, 0
          %v297 = vsel %vm274, %v256, 0
          %v300 = vsel %vm274, %v257, 0
          %v303 = vsel %vm274, %v258, 0
          %v306 = vsel %vm274, %v259, 0
          %v309 = vsel %vm274, %v260, 0
          %v312 = vsel %vm274, %v261, 0
          %v315 = vsel %vm274, %v262, 0
          %v318 = vsel %vm274, %v263, 0
          %v321 = vsel %vm274, %v264, 0
          %v324 = vsel %vm274, %v265, 0
          %v327 = vsel %vm274, %v266, 0
          %v330 = vsel %vm274, %v267, 0
          %v333 = vsel %vm274, %v268, 0
          %v336 = vsel %vm274, %v269, 0
          %v339 = vsel %vm274, %v270, 0
          %v342 = vsel %vm274, %v271, 0
          %v345 = vsel %vm274, %v272, 0
          %v348 = vsel %vm274, %v273, 0
          %350 = vmatpush.msra.mxu0 0.0
          %351 = vmatpush.msra.mxu0 0.0
          %352 = vmatpush.msra.mxu0 0.0
          %353 = vmatpush.msra.mxu0 0.0
          %354 = vmatpush.msra.mxu0 0.0
          %355 = vmatpush.msra.mxu0 0.0
          %356 = vmatpush.msra.mxu0 0.0
          %357 = vmatpush.msra.mxu0 0.0
          %358 = vmatpush.msra.mxu0 0.0
          %359 = vmatpush.msra.mxu0 0.0
          %360 = vmatpush.msra.mxu0 0.0
          %361 = vmatpush.msra.mxu0 0.0
          %362 = vmatpush.msra.mxu0 0.0
          %363 = vmatpush.msra.mxu0 0.0
          %364 = vmatpush.msra.mxu0 %v247
          %365 = vmatpush.msra.mxu0 %v245
          %366 = vmatmul.f32.gmra.mxu0 %v276
          %v367 = vpop.f32.mrf.mxu0
          %v368 = vadd.f32 0.0, %v367
          %369 = vmatmul.f32.gmra.mxu0 %v279
          %v370 = vpop.f32.mrf.mxu0
          %v371 = vadd.f32 0.0, %v370
          %372 = vmatmul.f32.gmra.mxu0 %v282
          %v373 = vpop.f32.mrf.mxu0
          %v374 = vadd.f32 0.0, %v373
          %375 = vmatmul.f32.gmra.mxu0 %v285
          %v376 = vpop.f32.mrf.mxu0
          %v377 = vadd.f32 0.0, %v376
          %378 = vmatmul.f32.gmra.mxu0 %v288
          %v379 = vpop.f32.mrf.mxu0
          %v380 = vadd.f32 0.0, %v379
          %381 = vmatmul.f32.gmra.mxu0 %v291
          %v382 = vpop.f32.mrf.mxu0
          %v383 = vadd.f32 0.0, %v382
          %384 = vmatmul.f32.gmra.mxu0 %v294
          %v385 = vpop.f32.mrf.mxu0
          %v386 = vadd.f32 0.0, %v385
          %387 = vmatmul.f32.gmra.mxu0 %v297
          %v388 = vpop.f32.mrf.mxu0
          %v389 = vadd.f32 0.0, %v388
          %390 = vmatmul.f32.gmra.mxu0 %v300
          %v391 = vpop.f32.mrf.mxu0
          %v392 = vadd.f32 0.0, %v391
          %393 = vmatmul.f32.gmra.mxu0 %v303
          %v394 = vpop.f32.mrf.mxu0
          %v395 = vadd.f32 0.0, %v394
          %396 = vmatmul.f32.gmra.mxu0 %v306
          %v397 = vpop.f32.mrf.mxu0
          %v398 = vadd.f32 0.0, %v397
          %399 = vmatmul.f32.gmra.mxu0 %v309
          %v400 = vpop.f32.mrf.mxu0
          %v401 = vadd.f32 0.0, %v400
          %402 = vmatmul.f32.gmra.mxu0 %v312
          %v403 = vpop.f32.mrf.mxu0
          %v404 = vadd.f32 0.0, %v403
          %405 = vmatmul.f32.gmra.mxu0 %v315
          %v406 = vpop.f32.mrf.mxu0
          %v407 = vadd.f32 0.0, %v406
          %408 = vmatmul.f32.gmra.mxu0 %v318
          %v409 = vpop.f32.mrf.mxu0
          %v410 = vadd.f32 0.0, %v409
          %411 = vmatmul.f32.gmra.mxu0 %v321
          %v412 = vpop.f32.mrf.mxu0
          %v413 = vadd.f32 0.0, %v412
          %414 = vmatmul.f32.gmra.mxu0 %v324
          %v415 = vpop.f32.mrf.mxu0
          %v416 = vadd.f32 0.0, %v415
          %417 = vmatmul.f32.gmra.mxu0 %v327
          %v418 = vpop.f32.mrf.mxu0
          %v419 = vadd.f32 0.0, %v418
          %420 = vmatmul.f32.gmra.mxu0 %v330
          %v421 = vpop.f32.mrf.mxu0
          %v422 = vadd.f32 0.0, %v421
          %423 = vmatmul.f32.gmra.mxu0 %v333
          %v424 = vpop.f32.mrf.mxu0
          %v425 = vadd.f32 0.0, %v424
          %426 = vmatmul.f32.gmra.mxu0 %v336
          %v427 = vpop.f32.mrf.mxu0
          %v428 = vadd.f32 0.0, %v427
          %429 = vmatmul.f32.gmra.mxu0 %v339
          %v430 = vpop.f32.mrf.mxu0
          %v431 = vadd.f32 0.0, %v430
          %432 = vmatmul.f32.gmra.mxu0 %v342
          %v433 = vpop.f32.mrf.mxu0
          %v434 = vadd.f32 0.0, %v433
          %435 = vmatmul.f32.gmra.mxu0 %v345
          %v436 = vpop.f32.mrf.mxu0
          %v437 = vadd.f32 0.0, %v436
          %438 = vmatmul.f32.gmra.mxu0 %v348
          %v439 = vpop.f32.mrf.mxu0
          %v440 = vadd.f32 0.0, %v439
          %441 = vdwg.mxu0
          %442 = vmatpush.msra.mxu0 0.0
          %443 = vmatpush.msra.mxu0 0.0
          %444 = vmatpush.msra.mxu0 0.0
          %445 = vmatpush.msra.mxu0 0.0
          %446 = vmatpush.msra.mxu0 0.0
          %447 = vmatpush.msra.mxu0 0.0
          %448 = vmatpush.msra.mxu0 0.0
          %449 = vmatpush.msra.mxu0 0.0
          %450 = vmatpush.msra.mxu0 0.0
          %451 = vmatpush.msra.mxu0 0.0
          %452 = vmatpush.msra.mxu0 0.0
          %453 = vmatpush.msra.mxu0 0.0
          %454 = vmatpush.msra.mxu0 0.0
          %455 = vmatpush.msra.mxu0 0.0
          %456 = vmatpush.msra.mxu0 %v248
          %457 = vmatpush.msra.mxu0 %v246
          %458 = vmatmul.f32.gmra.mxu0 %v276
          %v459 = vpop.f32.mrf.mxu0
          %v460 = vadd.f32 0.0, %v459
          %461 = vmatmul.f32.gmra.mxu0 %v279
          %v462 = vpop.f32.mrf.mxu0
          %v463 = vadd.f32 0.0, %v462
          %464 = vmatmul.f32.gmra.mxu0 %v282
          %v465 = vpop.f32.mrf.mxu0
          %v466 = vadd.f32 0.0, %v465
          %467 = vmatmul.f32.gmra.mxu0 %v285
          %v468 = vpop.f32.mrf.mxu0
          %v469 = vadd.f32 0.0, %v468
          %470 = vmatmul.f32.gmra.mxu0 %v288
          %v471 = vpop.f32.mrf.mxu0
          %v472 = vadd.f32 0.0, %v471
          %473 = vmatmul.f32.gmra.mxu0 %v291
          %v474 = vpop.f32.mrf.mxu0
          %v475 = vadd.f32 0.0, %v474
          %476 = vmatmul.f32.gmra.mxu0 %v294
          %v477 = vpop.f32.mrf.mxu0
          %v478 = vadd.f32 0.0, %v477
          %479 = vmatmul.f32.gmra.mxu0 %v297
          %v480 = vpop.f32.mrf.mxu0
          %v481 = vadd.f32 0.0, %v480
          %482 = vmatmul.f32.gmra.mxu0 %v300
          %v483 = vpop.f32.mrf.mxu0
          %v484 = vadd.f32 0.0, %v483
          %485 = vmatmul.f32.gmra.mxu0 %v303
          %v486 = vpop.f32.mrf.mxu0
          %v487 = vadd.f32 0.0, %v486
          %488 = vmatmul.f32.gmra.mxu0 %v306
          %v489 = vpop.f32.mrf.mxu0
          %v490 = vadd.f32 0.0, %v489
          %491 = vmatmul.f32.gmra.mxu0 %v309
          %v492 = vpop.f32.mrf.mxu0
          %v493 = vadd.f32 0.0, %v492
          %494 = vmatmul.f32.gmra.mxu0 %v312
          %v495 = vpop.f32.mrf.mxu0
          %v496 = vadd.f32 0.0, %v495
          %497 = vmatmul.f32.gmra.mxu0 %v315
          %v498 = vpop.f32.mrf.mxu0
          %v499 = vadd.f32 0.0, %v498
          %500 = vmatmul.f32.gmra.mxu0 %v318
          %v501 = vpop.f32.mrf.mxu0
          %v502 = vadd.f32 0.0, %v501
          %503 = vmatmul.f32.gmra.mxu0 %v321
          %v504 = vpop.f32.mrf.mxu0
          %v505 = vadd.f32 0.0, %v504
          %506 = vmatmul.f32.gmra.mxu0 %v324
          %v507 = vpop.f32.mrf.mxu0
          %v508 = vadd.f32 0.0, %v507
          %509 = vmatmul.f32.gmra.mxu0 %v327
          %v510 = vpop.f32.mrf.mxu0
          %v511 = vadd.f32 0.0, %v510
          %512 = vmatmul.f32.gmra.mxu0 %v330
          %v513 = vpop.f32.mrf.mxu0
          %v514 = vadd.f32 0.0, %v513
          %515 = vmatmul.f32.gmra.mxu0 %v333
          %v516 = vpop.f32.mrf.mxu0
          %v517 = vadd.f32 0.0, %v516
          %518 = vmatmul.f32.gmra.mxu0 %v336
          %v519 = vpop.f32.mrf.mxu0
          %v520 = vadd.f32 0.0, %v519
          %521 = vmatmul.f32.gmra.mxu0 %v339
          %v522 = vpop.f32.mrf.mxu0
          %v523 = vadd.f32 0.0, %v522
          %524 = vmatmul.f32.gmra.mxu0 %v342
          %v525 = vpop.f32.mrf.mxu0
          %v526 = vadd.f32 0.0, %v525
          %527 = vmatmul.f32.gmra.mxu0 %v345
          %v528 = vpop.f32.mrf.mxu0
          %v529 = vadd.f32 0.0, %v528
          %530 = vmatmul.f32.gmra.mxu0 %v348
          %v531 = vpop.f32.mrf.mxu0
          %v532 = vadd.f32 0.0, %v531
          %533 = vdwg.mxu0
          %534 = vrot.lane.b32.xlu0 %v368, 34
          %v535 = vpop.permute.xlu0 %534
          %536 = vrot.lane.b32.xlu0 %v460, 34
          %v537 = vpop.permute.xlu0 %536
          %v538 = vlaneseq
          %v539 = vand.u32 %v538, 127
          %vm540 = vcmp.lt.s32.totalorder %v539, 34
          %v541 = vsel %vm540, %v535, %v537
          %v542 = vsel %vm540, %v537, %v535
          %v543 = vld [vmem:[%s1] ss:$8 sm:$0x3]
          %v545 = vperm.slane %v543, 0
          %v546 = vperm.slane %v543, 1
          %v549 = vmul.f32 %v542, %v545
          %v550 = vmul.f32 %v541, %v546
          %v551 = vadd.f32 %v549, 0.0
          %v552 = vadd.f32 %v550, 0.0
          %553 = vrot.lane.b32.xlu0 %v371, 33
          %v554 = vpop.permute.xlu0 %553
          %555 = vrot.lane.b32.xlu0 %v463, 33
          %v556 = vpop.permute.xlu0 %555
          %vm557 = vcmp.lt.s32.totalorder %v539, 33
          %v558 = vsel %vm557, %v554, %v556
          %v559 = vsel %vm557, %v556, %v554
          %s560 = scalar_lea.vmem %s1, 1
          %v561 = vld [vmem:[%s560] ss:$8 sm:$0x3]
          %v563 = vperm.slane %v561, 0
          %v564 = vperm.slane %v561, 1
          %v567 = vmul.f32 %v559, %v563
          %v568 = vmul.f32 %v558, %v564
          %v569 = vadd.f32 %v551, %v567
          %v570 = vadd.f32 %v552, %v568
          %571 = vrot.lane.b32.xlu0 %v374, 32
          %v572 = vpop.permute.xlu0 %571
          %573 = vrot.lane.b32.xlu0 %v466, 32
          %v574 = vpop.permute.xlu0 %573
          %vm575 = vcmp.lt.s32.totalorder %v539, 32
          %v576 = vsel %vm575, %v572, %v574
          %v577 = vsel %vm575, %v574, %v572
          %s578 = scalar_lea.vmem %s1, 2
          %v579 = vld [vmem:[%s578] ss:$8 sm:$0x3]
          %v581 = vperm.slane %v579, 0
          %v582 = vperm.slane %v579, 1
          %v585 = vmul.f32 %v577, %v581
          %v586 = vmul.f32 %v576, %v582
          %v587 = vadd.f32 %v569, %v585
          %v588 = vadd.f32 %v570, %v586
          %589 = vrot.lane.b32.xlu0 %v377, 31
          %v590 = vpop.permute.xlu0 %589
          %591 = vrot.lane.b32.xlu0 %v469, 31
          %v592 = vpop.permute.xlu0 %591
          %vm593 = vcmp.lt.s32.totalorder %v539, 31
          %v594 = vsel %vm593, %v590, %v592
          %v595 = vsel %vm593, %v592, %v590
          %s596 = scalar_lea.vmem %s1, 3
          %v597 = vld [vmem:[%s596] ss:$8 sm:$0x3]
          %v599 = vperm.slane %v597, 0
          %v600 = vperm.slane %v597, 1
          %v603 = vmul.f32 %v595, %v599
          %v604 = vmul.f32 %v594, %v600
          %v605 = vadd.f32 %v587, %v603
          %v606 = vadd.f32 %v588, %v604
          %607 = vrot.lane.b32.xlu0 %v380, 30
          %v608 = vpop.permute.xlu0 %607
          %609 = vrot.lane.b32.xlu0 %v472, 30
          %v610 = vpop.permute.xlu0 %609
          %vm611 = vcmp.lt.s32.totalorder %v539, 30
          %v612 = vsel %vm611, %v608, %v610
          %v613 = vsel %vm611, %v610, %v608
          %s614 = scalar_lea.vmem %s1, 4
          %v615 = vld [vmem:[%s614] ss:$8 sm:$0x3]
          %v617 = vperm.slane %v615, 0
          %v618 = vperm.slane %v615, 1
          %v621 = vmul.f32 %v613, %v617
          %v622 = vmul.f32 %v612, %v618
          %v623 = vadd.f32 %v605, %v621
          %v624 = vadd.f32 %v606, %v622
          %625 = vrot.lane.b32.xlu0 %v383, 18
          %v626 = vpop.permute.xlu0 %625
          %627 = vrot.lane.b32.xlu0 %v475, 18
          %v628 = vpop.permute.xlu0 %627
          %vm629 = vcmp.lt.s32.totalorder %v539, 18
          %v630 = vsel %vm629, %v626, %v628
          %v631 = vsel %vm629, %v628, %v626
          %s632 = scalar_lea.vmem %s1, 5
          %v633 = vld [vmem:[%s632] ss:$8 sm:$0x3]
          %v635 = vperm.slane %v633, 0
          %v636 = vperm.slane %v633, 1
          %v639 = vmul.f32 %v631, %v635
          %v640 = vmul.f32 %v630, %v636
          %v641 = vadd.f32 %v623, %v639
          %v642 = vadd.f32 %v624, %v640
          %643 = vrot.lane.b32.xlu0 %v386, 17
          %v644 = vpop.permute.xlu0 %643
          %645 = vrot.lane.b32.xlu0 %v478, 17
          %v646 = vpop.permute.xlu0 %645
          %vm647 = vcmp.lt.s32.totalorder %v539, 17
          %v648 = vsel %vm647, %v644, %v646
          %v649 = vsel %vm647, %v646, %v644
          %s650 = scalar_lea.vmem %s1, 6
          %v651 = vld [vmem:[%s650] ss:$8 sm:$0x3]
          %v653 = vperm.slane %v651, 0
          %v654 = vperm.slane %v651, 1
          %v657 = vmul.f32 %v649, %v653
          %v658 = vmul.f32 %v648, %v654
          %v659 = vadd.f32 %v641, %v657
          %v660 = vadd.f32 %v642, %v658
          %661 = vrot.lane.b32.xlu0 %v389, 16
          %v662 = vpop.permute.xlu0 %661
          %663 = vrot.lane.b32.xlu0 %v481, 16
          %v664 = vpop.permute.xlu0 %663
          %vm665 = vcmp.lt.s32.totalorder %v539, 16
          %v666 = vsel %vm665, %v662, %v664
          %v667 = vsel %vm665, %v664, %v662
          %s668 = scalar_lea.vmem %s1, 7
          %v669 = vld [vmem:[%s668] ss:$8 sm:$0x3]
          %v671 = vperm.slane %v669, 0
          %v672 = vperm.slane %v669, 1
          %v675 = vmul.f32 %v667, %v671
          %v676 = vmul.f32 %v666, %v672
          %v677 = vadd.f32 %v659, %v675
          %v678 = vadd.f32 %v660, %v676
          %679 = vrot.lane.b32.xlu0 %v392, 15
          %v680 = vpop.permute.xlu0 %679
          %681 = vrot.lane.b32.xlu0 %v484, 15
          %v682 = vpop.permute.xlu0 %681
          %vm683 = vcmp.lt.s32.totalorder %v539, 15
          %v684 = vsel %vm683, %v680, %v682
          %v685 = vsel %vm683, %v682, %v680
          %s686 = scalar_lea.vmem %s1, 16
          %v687 = vld [vmem:[%s686] ss:$8 sm:$0x3]
          %v689 = vperm.slane %v687, 0
          %v690 = vperm.slane %v687, 1
          %v693 = vmul.f32 %v685, %v689
          %v694 = vmul.f32 %v684, %v690
          %v695 = vadd.f32 %v677, %v693
          %v696 = vadd.f32 %v678, %v694
          %697 = vrot.lane.b32.xlu0 %v395, 14
          %v698 = vpop.permute.xlu0 %697
          %699 = vrot.lane.b32.xlu0 %v487, 14
          %v700 = vpop.permute.xlu0 %699
          %vm701 = vcmp.lt.s32.totalorder %v539, 14
          %v702 = vsel %vm701, %v698, %v700
          %v703 = vsel %vm701, %v700, %v698
          %s704 = scalar_lea.vmem %s1, 17
          %v705 = vld [vmem:[%s704] ss:$8 sm:$0x3]
          %v707 = vperm.slane %v705, 0
          %v708 = vperm.slane %v705, 1
          %v711 = vmul.f32 %v703, %v707
          %v712 = vmul.f32 %v702, %v708
          %v713 = vadd.f32 %v695, %v711
          %v714 = vadd.f32 %v696, %v712
          %715 = vrot.lane.b32.xlu0 %v398, 2
          %v716 = vpop.permute.xlu0 %715
          %717 = vrot.lane.b32.xlu0 %v490, 2
          %v718 = vpop.permute.xlu0 %717
          %vm719 = vcmp.lt.s32.totalorder %v539, 2
          %v720 = vsel %vm719, %v716, %v718
          %v721 = vsel %vm719, %v718, %v716
          %s722 = scalar_lea.vmem %s1, 18
          %v723 = vld [vmem:[%s722] ss:$8 sm:$0x3]
          %v725 = vperm.slane %v723, 0
          %v726 = vperm.slane %v723, 1
          %v729 = vmul.f32 %v721, %v725
          %v730 = vmul.f32 %v720, %v726
          %v731 = vadd.f32 %v713, %v729
          %v732 = vadd.f32 %v714, %v730
          %733 = vrot.lane.b32.xlu0 %v401, 1
          %v734 = vpop.permute.xlu0 %733
          %735 = vrot.lane.b32.xlu0 %v493, 1
          %v736 = vpop.permute.xlu0 %735
          %vm737 = vcmp.lt.s32.totalorder %v539, 1
          %v738 = vsel %vm737, %v734, %v736
          %v739 = vsel %vm737, %v736, %v734
          %s740 = scalar_lea.vmem %s1, 19
          %v741 = vld [vmem:[%s740] ss:$8 sm:$0x3]
          %v743 = vperm.slane %v741, 0
          %v744 = vperm.slane %v741, 1
          %v747 = vmul.f32 %v739, %v743
          %v748 = vmul.f32 %v738, %v744
          %v749 = vadd.f32 %v731, %v747
          %v750 = vadd.f32 %v732, %v748
          %v751 = vadd.f32 %v749, %v404
          %v752 = vadd.f32 %v750, %v496
          %753 = vrot.lane.b32.xlu0 %v407, 127
          %v754 = vpop.permute.xlu0 %753
          %755 = vrot.lane.b32.xlu0 %v499, 127
          %v756 = vpop.permute.xlu0 %755
          %vm757 = vcmp.lt.s32.totalorder %v539, 127
          %v758 = vsel %vm757, %v754, %v756
          %v759 = vsel %vm757, %v756, %v754
          %s760 = scalar_lea.vmem %s1, 21
          %v761 = vld [vmem:[%s760] ss:$8 sm:$0x3]
          %v763 = vperm.slane %v761, 0
          %v764 = vperm.slane %v761, 1
          %v767 = vmul.f32 %v758, %v763
          %v768 = vmul.f32 %v759, %v764
          %v769 = vadd.f32 %v751, %v767
          %v770 = vadd.f32 %v752, %v768
          %771 = vrot.lane.b32.xlu0 %v410, 126
          %v772 = vpop.permute.xlu0 %771
          %773 = vrot.lane.b32.xlu0 %v502, 126
          %v774 = vpop.permute.xlu0 %773
          %vm775 = vcmp.lt.s32.totalorder %v539, 126
          %v776 = vsel %vm775, %v772, %v774
          %v777 = vsel %vm775, %v774, %v772
          %s778 = scalar_lea.vmem %s1, 22
          %v779 = vld [vmem:[%s778] ss:$8 sm:$0x3]
          %v781 = vperm.slane %v779, 0
          %v782 = vperm.slane %v779, 1
          %v785 = vmul.f32 %v776, %v781
          %v786 = vmul.f32 %v777, %v782
          %v787 = vadd.f32 %v769, %v785
          %v788 = vadd.f32 %v770, %v786
          %789 = vrot.lane.b32.xlu0 %v413, 114
          %v790 = vpop.permute.xlu0 %789
          %791 = vrot.lane.b32.xlu0 %v505, 114
          %v792 = vpop.permute.xlu0 %791
          %vm793 = vcmp.lt.s32.totalorder %v539, 114
          %v794 = vsel %vm793, %v790, %v792
          %v795 = vsel %vm793, %v792, %v790
          %s796 = scalar_lea.vmem %s1, 23
          %v797 = vld [vmem:[%s796] ss:$8 sm:$0x3]
          %v799 = vperm.slane %v797, 0
          %v800 = vperm.slane %v797, 1
          %v803 = vmul.f32 %v794, %v799
          %v804 = vmul.f32 %v795, %v800
          %v805 = vadd.f32 %v787, %v803
          %v806 = vadd.f32 %v788, %v804
          %807 = vrot.lane.b32.xlu0 %v416, 113
          %v808 = vpop.permute.xlu0 %807
          %809 = vrot.lane.b32.xlu0 %v508, 113
          %v810 = vpop.permute.xlu0 %809
          %vm811 = vcmp.lt.s32.totalorder %v539, 113
          %v812 = vsel %vm811, %v808, %v810
          %v813 = vsel %vm811, %v810, %v808
          %s814 = scalar_lea.vmem %s1, 32
          %v815 = vld [vmem:[%s814] ss:$8 sm:$0x3]
          %v817 = vperm.slane %v815, 0
          %v818 = vperm.slane %v815, 1
          %v821 = vmul.f32 %v812, %v817
          %v822 = vmul.f32 %v813, %v818
          %v823 = vadd.f32 %v805, %v821
          %v824 = vadd.f32 %v806, %v822
          %825 = vrot.lane.b32.xlu0 %v419, 112
          %v826 = vpop.permute.xlu0 %825
          %827 = vrot.lane.b32.xlu0 %v511, 112
          %v828 = vpop.permute.xlu0 %827
          %vm829 = vcmp.lt.s32.totalorder %v539, 112
          %v830 = vsel %vm829, %v826, %v828
          %v831 = vsel %vm829, %v828, %v826
          %s832 = scalar_lea.vmem %s1, 33
          %v833 = vld [vmem:[%s832] ss:$8 sm:$0x3]
          %v835 = vperm.slane %v833, 0
          %v836 = vperm.slane %v833, 1
          %v839 = vmul.f32 %v830, %v835
          %v840 = vmul.f32 %v831, %v836
          %v841 = vadd.f32 %v823, %v839
          %v842 = vadd.f32 %v824, %v840
          %843 = vrot.lane.b32.xlu0 %v422, 111
          %v844 = vpop.permute.xlu0 %843
          %845 = vrot.lane.b32.xlu0 %v514, 111
          %v846 = vpop.permute.xlu0 %845
          %vm847 = vcmp.lt.s32.totalorder %v539, 111
          %v848 = vsel %vm847, %v844, %v846
          %v849 = vsel %vm847, %v846, %v844
          %s850 = scalar_lea.vmem %s1, 34
          %v851 = vld [vmem:[%s850] ss:$8 sm:$0x3]
          %v853 = vperm.slane %v851, 0
          %v854 = vperm.slane %v851, 1
          %v857 = vmul.f32 %v848, %v853
          %v858 = vmul.f32 %v849, %v854
          %v859 = vadd.f32 %v841, %v857
          %v860 = vadd.f32 %v842, %v858
          %861 = vrot.lane.b32.xlu0 %v425, 110
          %v862 = vpop.permute.xlu0 %861
          %863 = vrot.lane.b32.xlu0 %v517, 110
          %v864 = vpop.permute.xlu0 %863
          %vm865 = vcmp.lt.s32.totalorder %v539, 110
          %v866 = vsel %vm865, %v862, %v864
          %v867 = vsel %vm865, %v864, %v862
          %s868 = scalar_lea.vmem %s1, 35
          %v869 = vld [vmem:[%s868] ss:$8 sm:$0x3]
          %v871 = vperm.slane %v869, 0
          %v872 = vperm.slane %v869, 1
          %v875 = vmul.f32 %v866, %v871
          %v876 = vmul.f32 %v867, %v872
          %v877 = vadd.f32 %v859, %v875
          %v878 = vadd.f32 %v860, %v876
          %879 = vrot.lane.b32.xlu0 %v428, 98
          %v880 = vpop.permute.xlu0 %879
          %881 = vrot.lane.b32.xlu0 %v520, 98
          %v882 = vpop.permute.xlu0 %881
          %vm883 = vcmp.lt.s32.totalorder %v539, 98
          %v884 = vsel %vm883, %v880, %v882
          %v885 = vsel %vm883, %v882, %v880
          %s886 = scalar_lea.vmem %s1, 36
          %v887 = vld [vmem:[%s886] ss:$8 sm:$0x3]
          %v889 = vperm.slane %v887, 0
          %v890 = vperm.slane %v887, 1
          %v893 = vmul.f32 %v884, %v889
          %v894 = vmul.f32 %v885, %v890
          %v895 = vadd.f32 %v877, %v893
          %v896 = vadd.f32 %v878, %v894
          %897 = vrot.lane.b32.xlu0 %v431, 97
          %v898 = vpop.permute.xlu0 %897
          %899 = vrot.lane.b32.xlu0 %v523, 97
          %v900 = vpop.permute.xlu0 %899
          %vm901 = vcmp.lt.s32.totalorder %v539, 97
          %v902 = vsel %vm901, %v898, %v900
          %v903 = vsel %vm901, %v900, %v898
          %s904 = scalar_lea.vmem %s1, 37
          %v905 = vld [vmem:[%s904] ss:$8 sm:$0x3]
          %v907 = vperm.slane %v905, 0
          %v908 = vperm.slane %v905, 1
          %v911 = vmul.f32 %v902, %v907
          %v912 = vmul.f32 %v903, %v908
          %v913 = vadd.f32 %v895, %v911
          %v914 = vadd.f32 %v896, %v912
          %915 = vrot.lane.b32.xlu0 %v434, 96
          %v916 = vpop.permute.xlu0 %915
          %917 = vrot.lane.b32.xlu0 %v526, 96
          %v918 = vpop.permute.xlu0 %917
          %vm919 = vcmp.lt.s32.totalorder %v539, 96
          %v920 = vsel %vm919, %v916, %v918
          %v921 = vsel %vm919, %v918, %v916
          %s922 = scalar_lea.vmem %s1, 38
          %v923 = vld [vmem:[%s922] ss:$8 sm:$0x3]
          %v925 = vperm.slane %v923, 0
          %v926 = vperm.slane %v923, 1
          %v929 = vmul.f32 %v920, %v925
          %v930 = vmul.f32 %v921, %v926
          %v931 = vadd.f32 %v913, %v929
          %v932 = vadd.f32 %v914, %v930
          %933 = vrot.lane.b32.xlu0 %v437, 95
          %v934 = vpop.permute.xlu0 %933
          %935 = vrot.lane.b32.xlu0 %v529, 95
          %v936 = vpop.permute.xlu0 %935
          %vm937 = vcmp.lt.s32.totalorder %v539, 95
          %v938 = vsel %vm937, %v934, %v936
          %v939 = vsel %vm937, %v936, %v934
          %s940 = scalar_lea.vmem %s1, 39
          %v941 = vld [vmem:[%s940] ss:$8 sm:$0x3]
          %v943 = vperm.slane %v941, 0
          %v944 = vperm.slane %v941, 1
          %v947 = vmul.f32 %v938, %v943
          %v948 = vmul.f32 %v939, %v944
          %v949 = vadd.f32 %v931, %v947
          %v950 = vadd.f32 %v932, %v948
          %951 = vrot.lane.b32.xlu0 %v440, 94
          %v952 = vpop.permute.xlu0 %951
          %953 = vrot.lane.b32.xlu0 %v532, 94
          %v954 = vpop.permute.xlu0 %953
          %vm955 = vcmp.lt.s32.totalorder %v539, 94
          %v956 = vsel %vm955, %v952, %v954
          %v957 = vsel %vm955, %v954, %v952
          %s958 = scalar_lea.vmem %s1, 48
          %v959 = vld [vmem:[%s958] ss:$8 sm:$0x3]
          %v961 = vperm.slane %v959, 0
          %v962 = vperm.slane %v959, 1
          %v965 = vmul.f32 %v956, %v961
          %v966 = vmul.f32 %v957, %v962
          %v967 = vadd.f32 %v949, %v965
          %v968 = vadd.f32 %v950, %v966
          %v969 = vxor.u32 %v967, 2147483648
          %v970 = vxor.u32 %v968, 2147483648
          %v971 = vmul.f32 %v969, 1.442695
          %v972 = vpow.pop %v971
          %v973 = vmul.f32 %v970, 1.442695
          %v974 = vpow.pop %v973
          %v975 = vadd.f32 %v972, 1.0
          %v976 = vadd.f32 %v974, 1.0
          %v977 = vrcp.pop %v975
          %v978 = vmul.f32 %v975, %v977
          %v979 = vsub.f32 1.0, %v978
          %v980 = vmul.f32 %v977, %v979
          %v981 = vadd.f32 %v977, %v980
          %vm982 = vweird.f32 %v975
          %vm983 = vweird.f32 %v977
          %vm984 = vmor %vm982, %vm983
          %v985 = vsel %vm984, %v977, %v981
          %v986 = vand.u32 2147483647, %v975
          %vm987 = vcmp.eq.f32.partialorder %v986, 8.507059e+37
          %v988 = vand.u32 %v975, 2147483648
          %v989 = vor.u32 1.1754944e-38, %v988
          %v990 = vsel %vm987, %v989, %v985
          %v991 = vmul.f32 1.0, %v990
          %v992 = vrcp.pop %v976
          %v993 = vmul.f32 %v976, %v992
          %v994 = vsub.f32 1.0, %v993
          %v995 = vmul.f32 %v992, %v994
          %v996 = vadd.f32 %v992, %v995
          %vm997 = vweird.f32 %v976
          %vm998 = vweird.f32 %v992
          %vm999 = vmor %vm997, %vm998
          %v1000 = vsel %vm999, %v992, %v996
          %v1001 = vand.u32 2147483647, %v976
          %vm1002 = vcmp.eq.f32.partialorder %v1001, 8.507059e+37
          %v1003 = vand.u32 %v976, 2147483648
          %v1004 = vor.u32 1.1754944e-38, %v1003
          %v1005 = vsel %vm1002, %v1004, %v1000
          %v1006 = vmul.f32 1.0, %v1005
          %1007 = vst [vmem:[%s188] sm:$0xff] %v991
          %1008 = vst [vmem:[%s188 + $0x8] sm:$0xff] %v1006
        $region40: #{tpu_custom_call.1} parent=31 // pred_fallthru
          _
        %s1009 = sand.u32 %s107, 1
        %s1010 = scalar_lea.sflag [#allocation5], %s1009
        %s1011 = sand.u32 %s107, 1
        %s1012 = smul.addr %s1011, 16
        %s1013 = scalar_lea.vmem [#allocation4], %s1012
        // Predicated region
        $region41: #{tpu_custom_call.1} parent=31 // pred_check
          %p1014 = pneg %p117
        $region42: #{tpu_custom_call.1} parent=31 // pred_check_branch
          %1016 = sbr.rel (%p1014) target = $region44
        $region43: #{tpu_custom_call.1} parent=31 // pred_region
          %1018 = vsyncadd %s1010, 0
          %s1019 = smul.addr %s21, 2
          %s1020 = smul.addr %s1019, 8
          %s1021 = scalar_lea.hbm %s3, %s1020
          %s1023 = sshll.u32 %s1013, 4
          %s1024 = int_to_ptr.vmem [resolvable:$true] %s1023
          %s1025 = sshll.u32 %s1021, 4
          %s1026 = int_to_ptr.hbm [resolvable:$true] %s1025
          %1028 = dma.vmem_to_hbm [thread:$0]  %s1024, 256, %s1026, %s1010
        $region44: #{tpu_custom_call.1} parent=31 // pred_fallthru
          _
      $region32: #{tpu_custom_call.1} parent=5 // pred_fallthru
        _
      %p1029 = scmp.le.s32.totalorder 2, %s12
      // Predicated region
      $region45: #{tpu_custom_call.1} parent=5 // pred_check
        %p1030 = pneg %p1029
      $region46: #{tpu_custom_call.1} parent=5 // pred_check_branch
        %1032 = sbr.rel (%p1030) target = $region48
      $region47: #{tpu_custom_call.1} parent=5 // pred_region
        %s1033 = ssub.s32 %s12, 2
        // Predicated region
        $region49: #{tpu_custom_call.1} parent=47 // pred_check
          %p1034 = pneg %p123
        $region50: #{tpu_custom_call.1} parent=47 // pred_check_branch
          %1036 = sbr.rel (%p1034) target = $region52
        $region51: #{tpu_custom_call.1} parent=47 // pred_region
          %s1037 = sand.u32 %s108, 1
          %s1038 = scalar_lea.sflag [#allocation5], %s1037
          %s1039 = sand.u32 %s108, 1
          %s1040 = smul.addr %s1039, 16
          %s1041 = scalar_lea.vmem [#allocation4], %s1040
          %1043 = dma.done %s1038, 256
        $region52: #{tpu_custom_call.1} parent=47 // pred_fallthru
          _
      $region48: #{tpu_custom_call.1} parent=5 // pred_fallthru
        _
    $region6: #{tpu_custom_call.1} parent=1 // loop_footer
      %s16 = sadd.s32 1, %s12
    $region7: #{tpu_custom_call.1} parent=1 // loop_footer_branch
      %11 = sbr.rel target = $region3
    $region8: #{tpu_custom_call.1} parent=1 // loop_exit
      _
    %1044 = vsyncpa [#allocation5], 1
    %s1045 = scalar_lea.sflag [#allocation5], 1
    %1046 = vsyncpa %s1045, 1

</llo_original>
